<compile_context>
chip_gen: v5e
topology: v5e:2x2
jax: 0.10.0
libtpu: 0.0.40
codegen_flags: <defaults>
</compile_context>

<pallas_src>
import functools

import jax
import jax.numpy as jnp
from jax.experimental import pallas as pl
from jax.experimental.pallas import tpu as pltpu

LANE = 128


def _round_up(x, m):
    return ((x + m - 1) // m) * m


def _critic_kernel(num_hidden, s_ref, a_ref, *refs):
    """refs = W1a, W1b, b1, [Wi, bi] * (num_hidden-1), wf_row, bf, out."""
    out_ref = refs[-1]
    p = refs[:-1]

    # First hidden layer: state @ W1a + action @ W1b + b1, then ReLU.
    h = jnp.dot(s_ref[...], p[0][...], preferred_element_type=jnp.float32)
    h = h + jnp.dot(a_ref[...], p[1][...], preferred_element_type=jnp.float32)
    h = jnp.maximum(h + p[2][...], 0.0)

    idx = 3
    for _ in range(num_hidden - 1):
        w_ref, b_ref = p[idx], p[idx + 1]
        idx += 2
        h = jnp.dot(h, w_ref[...], preferred_element_type=jnp.float32)
        h = jnp.maximum(h + b_ref[...], 0.0)

    # Final projection as VPU multiply + lane reduce (avoids an N=1 MXU matmul).
    wf_ref, bf_ref = p[idx], p[idx + 1]
    q = jnp.sum(h * wf_ref[...], axis=-1, keepdims=True) + bf_ref[...]   # (TB, 1)

    # Lane-dense store: broadcast across the 128 lanes (unmasked vst); wrapper
    # slices column 0 afterwards.
    out_ref[...] = jnp.broadcast_to(q, out_ref.shape).astype(out_ref.dtype)


def critic_forward(state, action, params, *, layer=1, compute_dtype=jnp.float32):
    """params = [(W1, b1), (W2, b2)?, (W3, b3)?, (Wf, bf)] depending on `layer`.

    Weights are stored (in_features, out_features); biases are 1-D.
    Returns (B, 1) float32 Q-values.
    """
    B, S = state.shape
    _, A = action.shape
    units = params[0][0].shape[1]

    U_pad = _round_up(units, LANE)
    TB = LANE if B >= LANE else _round_up(B, 8)
    B_pad = _round_up(B, TB)

    def pad2(x, rows, cols):
        x = jnp.asarray(x, compute_dtype)
        return jnp.pad(x, ((0, rows - x.shape[0]), (0, cols - x.shape[1])))

    # Inputs (batch-padded with zero rows; discarded after the kernel).
    s_p = pad2(state, B_pad, S)
    a_p = pad2(action, B_pad, A)

    # Parameters (zero-padded to lane-aligned widths; padding is inert).
    w1, b1 = params[0]
    w1 = jnp.asarray(w1, compute_dtype)
    flat = [
        pad2(w1[:S, :], S, U_pad),                 # W1a (state rows)
        pad2(w1[S:, :], A, U_pad),                 # W1b (action rows)
        pad2(jnp.reshape(b1, (1, -1)), 1, U_pad),  # b1
    ]
    for i in range(1, layer):
        w, b = params[i]
        flat.append(pad2(w, U_pad, U_pad))
        flat.append(pad2(jnp.reshape(b, (1, -1)), 1, U_pad))
    wf, bf = params[-1]
    flat.append(pad2(jnp.reshape(wf, (1, -1)), 1, U_pad))  # wf as a row
    flat.append(jnp.reshape(jnp.asarray(bf, jnp.float32), (1, 1)))  # scalar bias

    # Grid / specs: batch tiles stream, parameters stay resident.
    grid = (B_pad // TB,)
    batch_spec = lambda d: pl.BlockSpec((TB, d), lambda i: (i, 0))
    const_spec = lambda shp: pl.BlockSpec(shp, lambda i: (0, 0))
    in_specs = [batch_spec(S), batch_spec(A)]
    in_specs += [const_spec(p.shape) for p in flat]
    out_spec = pl.BlockSpec((TB, LANE), lambda i: (i, 0))

    # Cost estimate (advisory for XLA scheduling).
    flops = (2 * B_pad * (S + A) * U_pad
             + 2 * B_pad * U_pad * U_pad * (layer - 1)
             + 2 * B_pad * U_pad)
    itemsize = jnp.dtype(compute_dtype).itemsize
    bytes_accessed = ((s_p.size + a_p.size) * itemsize
                      + sum(int(p.size) * p.dtype.itemsize for p in flat)
                      + B_pad * LANE * 4)
    cost = pl.CostEstimate(flops=int(flops), transcendentals=0,
                           bytes_accessed=int(bytes_accessed))

    # VMEM budget: resident params + double-buffered batch tiles + activations.
    param_bytes = sum(int(p.size) * p.dtype.itemsize for p in flat)
    tile_bytes = (TB * S + TB * A) * itemsize + TB * LANE * 4
    act_bytes = 2 * TB * U_pad * 4
    vmem_limit = min(2 * (param_bytes + tile_bytes + act_bytes) + (16 << 20),
                     64 << 20)

    kernel = functools.partial(_critic_kernel, layer)
    out = pl.pallas_call(
        kernel,
        out_shape=jax.ShapeDtypeStruct((B_pad, LANE), jnp.float32),
        grid=grid,
        in_specs=in_specs,
        out_specs=out_spec,
        compiler_params=pltpu.CompilerParams(
            dimension_semantics=("parallel",),
            vmem_limit_bytes=int(vmem_limit),
        ),
        cost_estimate=cost,
    )(s_p, a_p, *flat)

    return out[:B, 0:1]


def init_critic_params(key, state_size, action_size, units, layer=1):
    """Deterministic PyTorch-style init: U(-1/sqrt(fan_in), 1/sqrt(fan_in))."""
    params = []
    in_dim = state_size + action_size
    dims = [(in_dim, units)]
    if layer > 1:
        dims.append((units, units))
    if layer > 2:
        dims.append((units, units))
    dims.append((units, 1))  # final fc1

    for (fan_in, fan_out) in dims:
        key, kw, kb = jax.random.split(key, 3)
        bound = 1.0 / jnp.sqrt(jnp.asarray(fan_in, jnp.float32))
        w = jax.random.uniform(kw, (fan_in, fan_out), jnp.float32, -bound, bound)
        b = jax.random.uniform(kb, (fan_out,), jnp.float32, -bound, bound)
        params.append((w, b))
    return params


def critic_reference(state, action, params, *, layer=1):
    """Pure-JAX reference for correctness checking."""
    x = jnp.concatenate([state, action], axis=1)
    for i in range(layer):
        w, b = params[i]
        x = jnp.maximum(x @ w + b, 0.0)
    wf, bf = params[-1]
    return x @ wf + bf


if __name__ == "__main__":
    # Small shapes consistent with the module's forward.
    B = 8
    state_size = 16
    action_size = 16
    units = 32
    layer = 3  # exercise fcs1, fcs2, fcs3 and the final fc1

    key = jax.random.PRNGKey(0)
    k_state, k_action, k_params = jax.random.split(key, 3)

    state = jax.random.normal(k_state, (B, state_size), jnp.float32)
    action = jax.random.normal(k_action, (B, action_size), jnp.float32)
    params = init_critic_params(k_params, state_size, action_size, units, layer)

    q = critic_forward(state, action, params, layer=layer)
    q = jax.block_until_ready(q)

    q_ref = critic_reference(state, action, params, layer=layer)
    assert q.shape == (B, 1), q.shape
    assert jnp.allclose(q, q_ref, atol=1e-5, rtol=1e-5), (q, q_ref)

    # TODO(synk): for production-scale B/units on v6e/v7x, pass
    # compute_dtype=jnp.bfloat16 (accumulation stays f32 via preferred_element_type)
    # and re-validate with a looser tolerance.

    print("KERNEL_OK")
</pallas_src>

<mosaic_0001>
module attributes {stable_mosaic.version = 11 : i64} {
  func.func @_critic_kernel(%arg0: i32, %arg1: memref<8x16xf32, #tpu.memory_space<vmem>>, %arg2: memref<8x16xf32, #tpu.memory_space<vmem>>, %arg3: memref<16x128xf32, #tpu.memory_space<vmem>>, %arg4: memref<16x128xf32, #tpu.memory_space<vmem>>, %arg5: memref<1x128xf32, #tpu.memory_space<vmem>>, %arg6: memref<128x128xf32, #tpu.memory_space<vmem>>, %arg7: memref<1x128xf32, #tpu.memory_space<vmem>>, %arg8: memref<128x128xf32, #tpu.memory_space<vmem>>, %arg9: memref<1x128xf32, #tpu.memory_space<vmem>>, %arg10: memref<1x128xf32, #tpu.memory_space<vmem>>, %arg11: memref<1x1xf32, #tpu.memory_space<vmem>>, %arg12: memref<8x128xf32, #tpu.memory_space<vmem>>) attributes {dimension_semantics = [#tpu.dimension_semantics<parallel>], iteration_bounds = array<i64: 1>, scalar_prefetch = 0 : i64, scratch_operands = 0 : i64, tpu.core_type = #tpu.core_type<tc>, window_params = [{transform_indices = @transform_0, window_bounds = array<i64: 8, 16>}, {transform_indices = @transform_1, window_bounds = array<i64: 8, 16>}, {pipeline_mode = #tpu.pipeline_mode<synchronous>, transform_indices = @transform_2, window_bounds = array<i64: 16, 128>}, {pipeline_mode = #tpu.pipeline_mode<synchronous>, transform_indices = @transform_3, window_bounds = array<i64: 16, 128>}, {pipeline_mode = #tpu.pipeline_mode<synchronous>, transform_indices = @transform_4, window_bounds = array<i64: 1, 128>}, {pipeline_mode = #tpu.pipeline_mode<synchronous>, transform_indices = @transform_5, window_bounds = array<i64: 128, 128>}, {pipeline_mode = #tpu.pipeline_mode<synchronous>, transform_indices = @transform_6, window_bounds = array<i64: 1, 128>}, {pipeline_mode = #tpu.pipeline_mode<synchronous>, transform_indices = @transform_7, window_bounds = array<i64: 128, 128>}, {pipeline_mode = #tpu.pipeline_mode<synchronous>, transform_indices = @transform_8, window_bounds = array<i64: 1, 128>}, {pipeline_mode = #tpu.pipeline_mode<synchronous>, transform_indices = @transform_9, window_bounds = array<i64: 1, 128>}, {pipeline_mode = #tpu.pipeline_mode<synchronous>, transform_indices = @transform_10, window_bounds = array<i64: 1, 1>}, {transform_indices = @transform_11, window_bounds = array<i64: 8, 128>}]} {
    %c0 = arith.constant 0 : index
    %c0_0 = arith.constant 0 : index
    %0 = vector.load %arg1[%c0, %c0_0] : memref<8x16xf32, #tpu.memory_space<vmem>>, vector<8x16xf32>
    %c0_1 = arith.constant 0 : index
    %c0_2 = arith.constant 0 : index
    %1 = vector.load %arg3[%c0_1, %c0_2] : memref<16x128xf32, #tpu.memory_space<vmem>>, vector<16x128xf32>
    %cst = arith.constant dense<0.000000e+00> : vector<8x128xf32>
    %2 = tpu.matmul %0, %1, %cst {dimension_numbers = #tpu.dot_dimension_numbers<[1], [0], [0], [1], [0, 0, 1, 1], [], []>} : vector<8x16xf32>, vector<16x128xf32>, vector<8x128xf32> -> vector<8x128xf32>
    %c0_3 = arith.constant 0 : index
    %c0_4 = arith.constant 0 : index
    %3 = vector.load %arg2[%c0_3, %c0_4] : memref<8x16xf32, #tpu.memory_space<vmem>>, vector<8x16xf32>
    %c0_5 = arith.constant 0 : index
    %c0_6 = arith.constant 0 : index
    %4 = vector.load %arg4[%c0_5, %c0_6] : memref<16x128xf32, #tpu.memory_space<vmem>>, vector<16x128xf32>
    %cst_7 = arith.constant dense<0.000000e+00> : vector<8x128xf32>
    %5 = tpu.matmul %3, %4, %cst_7 {dimension_numbers = #tpu.dot_dimension_numbers<[1], [0], [0], [1], [0, 0, 1, 1], [], []>} : vector<8x16xf32>, vector<16x128xf32>, vector<8x128xf32> -> vector<8x128xf32>
    %6 = arith.addf %2, %5 : vector<8x128xf32>
    %c0_8 = arith.constant 0 : index
    %c0_9 = arith.constant 0 : index
    %7 = vector.load %arg5[%c0_8, %c0_9] : memref<1x128xf32, #tpu.memory_space<vmem>>, vector<1x128xf32>
    %8 = vector.broadcast %7 : vector<1x128xf32> to vector<8x128xf32>
    %9 = arith.addf %6, %8 : vector<8x128xf32>
    %cst_10 = arith.constant 0.000000e+00 : f32
    %10 = vector.broadcast %cst_10 : f32 to vector<8x128xf32>
    %11 = arith.maximumf %9, %10 : vector<8x128xf32>
    %c0_11 = arith.constant 0 : index
    %c0_12 = arith.constant 0 : index
    %12 = vector.load %arg6[%c0_11, %c0_12] : memref<128x128xf32, #tpu.memory_space<vmem>>, vector<128x128xf32>
    %cst_13 = arith.constant dense<0.000000e+00> : vector<8x128xf32>
    %13 = tpu.matmul %11, %12, %cst_13 {dimension_numbers = #tpu.dot_dimension_numbers<[1], [0], [0], [1], [0, 0, 1, 1], [], []>} : vector<8x128xf32>, vector<128x128xf32>, vector<8x128xf32> -> vector<8x128xf32>
    %c0_14 = arith.constant 0 : index
    %c0_15 = arith.constant 0 : index
    %14 = vector.load %arg7[%c0_14, %c0_15] : memref<1x128xf32, #tpu.memory_space<vmem>>, vector<1x128xf32>
    %15 = vector.broadcast %14 : vector<1x128xf32> to vector<8x128xf32>
    %16 = arith.addf %13, %15 : vector<8x128xf32>
    %cst_16 = arith.constant 0.000000e+00 : f32
    %17 = vector.broadcast %cst_16 : f32 to vector<8x128xf32>
    %18 = arith.maximumf %16, %17 : vector<8x128xf32>
    %c0_17 = arith.constant 0 : index
    %c0_18 = arith.constant 0 : index
    %19 = vector.load %arg8[%c0_17, %c0_18] : memref<128x128xf32, #tpu.memory_space<vmem>>, vector<128x128xf32>
    %cst_19 = arith.constant dense<0.000000e+00> : vector<8x128xf32>
    %20 = tpu.matmul %18, %19, %cst_19 {dimension_numbers = #tpu.dot_dimension_numbers<[1], [0], [0], [1], [0, 0, 1, 1], [], []>} : vector<8x128xf32>, vector<128x128xf32>, vector<8x128xf32> -> vector<8x128xf32>
    %c0_20 = arith.constant 0 : index
    %c0_21 = arith.constant 0 : index
    %21 = vector.load %arg9[%c0_20, %c0_21] : memref<1x128xf32, #tpu.memory_space<vmem>>, vector<1x128xf32>
    %22 = vector.broadcast %21 : vector<1x128xf32> to vector<8x128xf32>
    %23 = arith.addf %20, %22 : vector<8x128xf32>
    %cst_22 = arith.constant 0.000000e+00 : f32
    %24 = vector.broadcast %cst_22 : f32 to vector<8x128xf32>
    %25 = arith.maximumf %23, %24 : vector<8x128xf32>
    %c0_23 = arith.constant 0 : index
    %c0_24 = arith.constant 0 : index
    %26 = vector.load %arg10[%c0_23, %c0_24] : memref<1x128xf32, #tpu.memory_space<vmem>>, vector<1x128xf32>
    %27 = vector.broadcast %26 : vector<1x128xf32> to vector<8x128xf32>
    %28 = arith.mulf %25, %27 : vector<8x128xf32>
    %cst_25 = arith.constant dense<0.000000e+00> : vector<8xf32>
    %29 = vector.multi_reduction <add>, %28, %cst_25 [1] : vector<8x128xf32> to vector<8xf32>
    %30 = vector.shape_cast %29 : vector<8xf32> to vector<8x1xf32>
    %c0_26 = arith.constant 0 : index
    %c0_27 = arith.constant 0 : index
    %31 = vector.load %arg11[%c0_26, %c0_27] : memref<1x1xf32, #tpu.memory_space<vmem>>, vector<1x1xf32>
    %32 = vector.broadcast %31 : vector<1x1xf32> to vector<8x1xf32>
    %33 = arith.addf %30, %32 : vector<8x1xf32>
    %34 = vector.shape_cast %33 : vector<8x1xf32> to vector<8x1xf32>
    %35 = vector.broadcast %34 : vector<8x1xf32> to vector<8x128xf32>
    %c0_28 = arith.constant 0 : index
    %c0_29 = arith.constant 0 : index
    %36 = vector.load %arg12[%c0_28, %c0_29] : memref<8x128xf32, #tpu.memory_space<vmem>>, vector<8x128xf32>
    tpu.vector_store %arg12[%c0_28, %c0_29], %35 {strides = array<i32>} : memref<8x128xf32, #tpu.memory_space<vmem>>, vector<8x128xf32>,
    return
  }
  func.func @transform_0(%arg0: i32) -> (i32, i32) {
    %c0_i32 = arith.constant 0 : i32
    %c0_i32_0 = arith.constant 0 : i32
    return %arg0, %c0_i32 : i32, i32
  }
  func.func @transform_1(%arg0: i32) -> (i32, i32) {
    %c0_i32 = arith.constant 0 : i32
    %c0_i32_0 = arith.constant 0 : i32
    return %arg0, %c0_i32 : i32, i32
  }
  func.func @transform_2(%arg0: i32) -> (i32, i32) {
    %c0_i32 = arith.constant 0 : i32
    %c0_i32_0 = arith.constant 0 : i32
    %c0_i32_1 = arith.constant 0 : i32
    return %c0_i32, %c0_i32_0 : i32, i32
  }
  func.func @transform_3(%arg0: i32) -> (i32, i32) {
    %c0_i32 = arith.constant 0 : i32
    %c0_i32_0 = arith.constant 0 : i32
    %c0_i32_1 = arith.constant 0 : i32
    return %c0_i32, %c0_i32_0 : i32, i32
  }
  func.func @transform_4(%arg0: i32) -> (i32, i32) {
    %c0_i32 = arith.constant 0 : i32
    %c0_i32_0 = arith.constant 0 : i32
    %c0_i32_1 = arith.constant 0 : i32
    return %c0_i32, %c0_i32_0 : i32, i32
  }
  func.func @transform_5(%arg0: i32) -> (i32, i32) {
    %c0_i32 = arith.constant 0 : i32
    %c0_i32_0 = arith.constant 0 : i32
    %c0_i32_1 = arith.constant 0 : i32
    return %c0_i32, %c0_i32_0 : i32, i32
  }
  func.func @transform_6(%arg0: i32) -> (i32, i32) {
    %c0_i32 = arith.constant 0 : i32
    %c0_i32_0 = arith.constant 0 : i32
    %c0_i32_1 = arith.constant 0 : i32
    return %c0_i32, %c0_i32_0 : i32, i32
  }
  func.func @transform_7(%arg0: i32) -> (i32, i32) {
    %c0_i32 = arith.constant 0 : i32
    %c0_i32_0 = arith.constant 0 : i32
    %c0_i32_1 = arith.constant 0 : i32
    return %c0_i32, %c0_i32_0 : i32, i32
  }
  func.func @transform_8(%arg0: i32) -> (i32, i32) {
    %c0_i32 = arith.constant 0 : i32
    %c0_i32_0 = arith.constant 0 : i32
    %c0_i32_1 = arith.constant 0 : i32
    return %c0_i32, %c0_i32_0 : i32, i32
  }
  func.func @transform_9(%arg0: i32) -> (i32, i32) {
    %c0_i32 = arith.constant 0 : i32
    %c0_i32_0 = arith.constant 0 : i32
    %c0_i32_1 = arith.constant 0 : i32
    return %c0_i32, %c0_i32_0 : i32, i32
  }
  func.func @transform_10(%arg0: i32) -> (i32, i32) {
    %c0_i32 = arith.constant 0 : i32
    %c0_i32_0 = arith.constant 0 : i32
    %c0_i32_1 = arith.constant 0 : i32
    return %c0_i32, %c0_i32_0 : i32, i32
  }
  func.func @transform_11(%arg0: i32) -> (i32, i32) {
    %c0_i32 = arith.constant 0 : i32
    %c0_i32_0 = arith.constant 0 : i32
    return %arg0, %c0_i32 : i32, i32
  }
}

</mosaic_0001>

<llo_original>
// kernel: tpu_custom_call.1
$region0: #{tpu_custom_call.1}
  #allocation0 [shape = 'u32[]', space=smem, size = 0x4, offset = 0x4, fixed_abs, tag = 'smem constant byte address 0x4 - core index']
  #allocation1 [shape = 'u32[72,128]{1,0:T(1,128)}', space=vmem, size = 0x9000, scoped, tag = 'internal scratch']
  #allocation2 [shape = 'f32[1,1]{1,0:T(1,128)S(1)}', space=vmem, size = 0x200, scoped, tag = 'scoped memory for tpu_custom_call.1']
  %s0 = inlined_call_operand.hbm [shape: f32[8,16], index: 0, kind: input, shape index: {}]
  %s1 = inlined_call_operand.hbm [shape: f32[8,16], index: 1, kind: input, shape index: {}]
  %s2 = inlined_call_operand.hbm [shape: f32[16,128], index: 2, kind: input, shape index: {}]
  %s3 = inlined_call_operand.hbm [shape: f32[16,128], index: 3, kind: input, shape index: {}]
  %s4 = inlined_call_operand.vmem [shape: f32[1,128], index: 4, kind: input, shape index: {}]
  %s5 = inlined_call_operand.hbm [shape: f32[128,128], index: 5, kind: input, shape index: {}]
  %s6 = inlined_call_operand.vmem [shape: f32[1,128], index: 6, kind: input, shape index: {}]
  %s7 = inlined_call_operand.hbm [shape: f32[128,128], index: 7, kind: input, shape index: {}]
  %s8 = inlined_call_operand.vmem [shape: f32[1,128], index: 8, kind: input, shape index: {}]
  %s9 = inlined_call_operand.vmem [shape: f32[1,128], index: 9, kind: input, shape index: {}]
  %s10 = inlined_call_operand.<no memory space> [shape: f32[1,1], index: 10, kind: input, shape index: {}]
  %s11 = inlined_call_operand.hbm [shape: f32[8,128], index: 11, kind: output, shape index: {}]
  %s12 = sld [smem:[#allocation0]]
  $region78: #{tpu_custom_call.1} parent=0
    _
  %s14 = ssub.s32 1, %s12
  %s15 = scalar_select 0, %s14, %s12
  %v16 = vstv %s10
  %17 = vst [vmem:[#allocation2] sm:$0x1] %v16
  $region1: #{tpu_custom_call.1} parent=0
    #allocation3 [shape = 'u8[4096]{0}', space=vmem, size = 0x1000, scoped, tag = 'input window, operand 0, single buffered']
    #allocation4 [shape = 's32[1]{0}', space=sflag, size = 0x4, scoped, tag = 'scoped memory for tpu_custom_call.1']
    #allocation5 [shape = 's32[1]{0}', space=sflag, size = 0x4, scoped, tag = 'scoped memory for tpu_custom_call.1']
    #allocation6 [shape = 'u8[4096]{0}', space=vmem, size = 0x1000, scoped, tag = 'input window, operand 1, single buffered']
    #allocation7 [shape = 's32[1]{0}', space=sflag, size = 0x4, scoped, tag = 'scoped memory for tpu_custom_call.1']
    #allocation8 [shape = 'u8[8192]{0}', space=vmem, size = 0x2000, scoped, tag = 'input window, operand 2, single buffered']
    #allocation9 [shape = 'u8[8192]{0}', space=vmem, size = 0x2000, scoped, tag = 'input window, operand 3, single buffered']
    #allocation10 [shape = 's32[1]{0}', space=sflag, size = 0x4, scoped, tag = 'scoped memory for tpu_custom_call.1']
    #allocation11 [shape = 'u8[65536]{0}', space=vmem, size = 0x10000, scoped, tag = 'input window, operand 5, single buffered']
    #allocation12 [shape = 'u8[65536]{0}', space=vmem, size = 0x10000, scoped, tag = 'input window, operand 7, single buffered']
    #allocation13 [shape = 's32[1]{0}', space=sflag, size = 0x4, scoped, tag = 'scoped memory for tpu_custom_call.1']
    #allocation14 [shape = 'u8[4096]{0}', space=vmem, size = 0x1000, scoped, tag = 'output window, operand 0, single buffered']
    %18 = vsyncpa [#allocation4], 0
    %19 = vsyncpa [#allocation7], 0
    %20 = vsyncpa [#allocation10], 0
    %21 = vsyncpa [#allocation13], 0
    %22 = vsyncpa [#allocation5], 0
    // Predicated region
    $region2: #{tpu_custom_call.1} parent=1 // pred_check
      _
    $region3: #{tpu_custom_call.1} parent=1 // pred_check_branch
      %24 = sbr.rel (0) target = $region5
    $region4: #{tpu_custom_call.1} parent=1 // pred_region
      %26 = vsyncadd [#allocation4], 0
      %s28 = sshll.u32 %s0, 4
      %s29 = int_to_ptr.hbm [resolvable:$true] %s28
      %s30 = sshll.u32 [#allocation3], 4
      %s31 = int_to_ptr.vmem [resolvable:$true] %s30
      %33 = dma.hbm_to_vmem [thread:$0]  %s29, 128, %s31, [#allocation4]
    $region5: #{tpu_custom_call.1} parent=1 // pred_fallthru
      _
    // Predicated region
    $region6: #{tpu_custom_call.1} parent=1 // pred_check
      _
    $region7: #{tpu_custom_call.1} parent=1 // pred_check_branch
      %35 = sbr.rel (0) target = $region9
    $region8: #{tpu_custom_call.1} parent=1 // pred_region
      %37 = vsyncadd [#allocation7], 0
      %s39 = sshll.u32 %s1, 4
      %s40 = int_to_ptr.hbm [resolvable:$true] %s39
      %s41 = sshll.u32 [#allocation6], 4
      %s42 = int_to_ptr.vmem [resolvable:$true] %s41
      %44 = dma.hbm_to_vmem [thread:$0]  %s40, 128, %s42, [#allocation7]
    $region9: #{tpu_custom_call.1} parent=1 // pred_fallthru
      _
    // Predicated region
    $region10: #{tpu_custom_call.1} parent=1 // pred_check
      _
    $region11: #{tpu_custom_call.1} parent=1 // pred_check_branch
      %46 = sbr.rel (0) target = $region13
    $region12: #{tpu_custom_call.1} parent=1 // pred_region
      %48 = vsyncadd [#allocation7], 0
      %s49 = sshll.u32 %s2, 4
      %s50 = int_to_ptr.hbm [resolvable:$true] %s49
      %s51 = sshll.u32 [#allocation8], 4
      %s52 = int_to_ptr.vmem [resolvable:$true] %s51
      %57 = dma.hbm_to_vmem [thread:$0]  %s50, 256, %s52, [#allocation7], 128, 128, 8
    $region13: #{tpu_custom_call.1} parent=1 // pred_fallthru
      _
    // Predicated region
    $region14: #{tpu_custom_call.1} parent=1 // pred_check
      _
    $region15: #{tpu_custom_call.1} parent=1 // pred_check_branch
      %59 = sbr.rel (0) target = $region17
    $region16: #{tpu_custom_call.1} parent=1 // pred_region
      %61 = vsyncadd [#allocation10], 0
      %s62 = sshll.u32 %s3, 4
      %s63 = int_to_ptr.hbm [resolvable:$true] %s62
      %s64 = sshll.u32 [#allocation9], 4
      %s65 = int_to_ptr.vmem [resolvable:$true] %s64
      %70 = dma.hbm_to_vmem [thread:$0]  %s63, 256, %s65, [#allocation10], 128, 128, 8
    $region17: #{tpu_custom_call.1} parent=1 // pred_fallthru
      _
    // Predicated region
    $region18: #{tpu_custom_call.1} parent=1 // pred_check
      _
    $region19: #{tpu_custom_call.1} parent=1 // pred_check_branch
      %72 = sbr.rel (0) target = $region21
    $region20: #{tpu_custom_call.1} parent=1 // pred_region
      _
    $region21: #{tpu_custom_call.1} parent=1 // pred_fallthru
      _
    // Predicated region
    $region22: #{tpu_custom_call.1} parent=1 // pred_check
      _
    $region23: #{tpu_custom_call.1} parent=1 // pred_check_branch
      %74 = sbr.rel (0) target = $region25
    $region24: #{tpu_custom_call.1} parent=1 // pred_region
      %76 = vsyncadd [#allocation10], 0
      %s77 = sshll.u32 %s5, 4
      %s78 = int_to_ptr.hbm [resolvable:$true] %s77
      %s79 = sshll.u32 [#allocation11], 4
      %s80 = int_to_ptr.vmem [resolvable:$true] %s79
      %85 = dma.hbm_to_vmem [thread:$0]  %s78, 2048, %s80, [#allocation10], 128, 128, 8
    $region25: #{tpu_custom_call.1} parent=1 // pred_fallthru
      _
    // Predicated region
    $region26: #{tpu_custom_call.1} parent=1 // pred_check
      _
    $region27: #{tpu_custom_call.1} parent=1 // pred_check_branch
      %87 = sbr.rel (0) target = $region29
    $region28: #{tpu_custom_call.1} parent=1 // pred_region
      _
    $region29: #{tpu_custom_call.1} parent=1 // pred_fallthru
      _
    // Predicated region
    $region30: #{tpu_custom_call.1} parent=1 // pred_check
      _
    $region31: #{tpu_custom_call.1} parent=1 // pred_check_branch
      %89 = sbr.rel (0) target = $region33
    $region32: #{tpu_custom_call.1} parent=1 // pred_region
      %91 = vsyncadd [#allocation13], 0
      %s92 = sshll.u32 %s7, 4
      %s93 = int_to_ptr.hbm [resolvable:$true] %s92
      %s94 = sshll.u32 [#allocation12], 4
      %s95 = int_to_ptr.vmem [resolvable:$true] %s94
      %100 = dma.hbm_to_vmem [thread:$0]  %s93, 2048, %s95, [#allocation13], 128, 128, 8
    $region33: #{tpu_custom_call.1} parent=1 // pred_fallthru
      _
    // Predicated region
    $region34: #{tpu_custom_call.1} parent=1 // pred_check
      _
    $region35: #{tpu_custom_call.1} parent=1 // pred_check_branch
      %102 = sbr.rel (0) target = $region37
    $region36: #{tpu_custom_call.1} parent=1 // pred_region
      _
    $region37: #{tpu_custom_call.1} parent=1 // pred_fallthru
      _
    // Predicated region
    $region38: #{tpu_custom_call.1} parent=1 // pred_check
      _
    $region39: #{tpu_custom_call.1} parent=1 // pred_check_branch
      %104 = sbr.rel (0) target = $region41
    $region40: #{tpu_custom_call.1} parent=1 // pred_region
      _
    $region41: #{tpu_custom_call.1} parent=1 // pred_fallthru
      _
    // Predicated region
    $region42: #{tpu_custom_call.1} parent=1 // pred_check
      _
    $region43: #{tpu_custom_call.1} parent=1 // pred_check_branch
      %106 = sbr.rel (0) target = $region45
    $region44: #{tpu_custom_call.1} parent=1 // pred_region
      _
    $region45: #{tpu_custom_call.1} parent=1 // pred_fallthru
      _
    // Predicated region
    $region46: #{tpu_custom_call.1} parent=1 // pred_check
      _
    $region47: #{tpu_custom_call.1} parent=1 // pred_check_branch
      %108 = sbr.rel (0) target = $region49
    $region48: #{tpu_custom_call.1} parent=1 // pred_region
      %110 = dma.done [#allocation4], 128
    $region49: #{tpu_custom_call.1} parent=1 // pred_fallthru
      _
    // Predicated region
    $region50: #{tpu_custom_call.1} parent=1 // pred_check
      _
    $region51: #{tpu_custom_call.1} parent=1 // pred_check_branch
      %112 = sbr.rel (0) target = $region53
    $region52: #{tpu_custom_call.1} parent=1 // pred_region
      %114 = dma.done [#allocation7], 128
    $region53: #{tpu_custom_call.1} parent=1 // pred_fallthru
      _
    // Predicated region
    $region54: #{tpu_custom_call.1} parent=1 // pred_check
      _
    $region55: #{tpu_custom_call.1} parent=1 // pred_check_branch
      %116 = sbr.rel (0) target = $region57
    $region56: #{tpu_custom_call.1} parent=1 // pred_region
      %118 = dma.done [#allocation7], 256
    $region57: #{tpu_custom_call.1} parent=1 // pred_fallthru
      _
    // Predicated region
    $region58: #{tpu_custom_call.1} parent=1 // pred_check
      _
    $region59: #{tpu_custom_call.1} parent=1 // pred_check_branch
      %120 = sbr.rel (0) target = $region61
    $region60: #{tpu_custom_call.1} parent=1 // pred_region
      %122 = dma.done [#allocation10], 256
    $region61: #{tpu_custom_call.1} parent=1 // pred_fallthru
      _
    // Predicated region
    $region62: #{tpu_custom_call.1} parent=1 // pred_check
      _
    $region63: #{tpu_custom_call.1} parent=1 // pred_check_branch
      %124 = sbr.rel (0) target = $region65
    $region64: #{tpu_custom_call.1} parent=1 // pred_region
      %126 = dma.done [#allocation10], 2048
    $region65: #{tpu_custom_call.1} parent=1 // pred_fallthru
      _
    // Predicated region
    $region66: #{tpu_custom_call.1} parent=1 // pred_check
      _
    $region67: #{tpu_custom_call.1} parent=1 // pred_check_branch
      %128 = sbr.rel (0) target = $region69
    $region68: #{tpu_custom_call.1} parent=1 // pred_region
      %130 = dma.done [#allocation13], 2048
    $region69: #{tpu_custom_call.1} parent=1 // pred_fallthru
      _
    %v131 = vld [vmem:[#allocation3] sm:$0xff]
    %v132 = vld [vmem:[#allocation8] sm:$0xff]
    %v133 = vld [vmem:[#allocation8 + $0x8] sm:$0xff]
    %v134 = vld [vmem:[#allocation6] sm:$0xff]
    %v135 = vld [vmem:[#allocation9] sm:$0xff]
    %v136 = vld [vmem:[#allocation9 + $0x8] sm:$0xff]
    %vm137 = vcmask 130048
    %v139 = vsel %vm137, %v134, 0
    %141 = vmatpush.msra.mxu0 0.0
    %142 = vmatpush.msra.mxu0 0.0
    %143 = vmatpush.msra.mxu0 0.0
    %144 = vmatpush.msra.mxu0 0.0
    %145 = vmatpush.msra.mxu0 0.0
    %146 = vmatpush.msra.mxu0 0.0
    %147 = vmatpush.msra.mxu0 0.0
    %148 = vmatpush.msra.mxu0 0.0
    %149 = vmatpush.msra.mxu0 0.0
    %150 = vmatpush.msra.mxu0 0.0
    %151 = vmatpush.msra.mxu0 0.0
    %152 = vmatpush.msra.mxu0 0.0
    %153 = vmatpush.msra.mxu0 0.0
    %154 = vmatpush.msra.mxu0 0.0
    %155 = vmatpush.msra.mxu0 %v136
    %156 = vmatpush.msra.mxu0 %v135
    %157 = vmatmul.f32.gmra.mxu0 %v139
    %v158 = vpop.f32.mrf.mxu0
    %v159 = vadd.f32 0.0, %v158
    %160 = vdwg.mxu0
    %v162 = vsel %vm137, %v131, 0
    %164 = vmatpush.msra.mxu0 0.0
    %165 = vmatpush.msra.mxu0 0.0
    %166 = vmatpush.msra.mxu0 0.0
    %167 = vmatpush.msra.mxu0 0.0
    %168 = vmatpush.msra.mxu0 0.0
    %169 = vmatpush.msra.mxu0 0.0
    %170 = vmatpush.msra.mxu0 0.0
    %171 = vmatpush.msra.mxu0 0.0
    %172 = vmatpush.msra.mxu0 0.0
    %173 = vmatpush.msra.mxu0 0.0
    %174 = vmatpush.msra.mxu0 0.0
    %175 = vmatpush.msra.mxu0 0.0
    %176 = vmatpush.msra.mxu0 0.0
    %177 = vmatpush.msra.mxu0 0.0
    %178 = vmatpush.msra.mxu0 %v133
    %179 = vmatpush.msra.mxu0 %v132
    %180 = vmatmul.f32.gmra.mxu0 %v162
    %v181 = vpop.f32.mrf.mxu0
    %v182 = vadd.f32 %v159, %v181
    %183 = vdwg.mxu0
    %v184 = vld [vmem:[%s4] sm:$0x1]
    %v186 = vperm.slane %v184, 0
    %v188 = vadd.f32 %v182, %v186
    %v189 = vmax.f32 %v188, 0.0
    %v190 = vld [vmem:[#allocation11] sm:$0xff]
    %v191 = vld [vmem:[#allocation11 + $0x8] sm:$0xff]
    %v192 = vld [vmem:[#allocation11 + $0x10] sm:$0xff]
    %v193 = vld [vmem:[#allocation11 + $0x18] sm:$0xff]
    %v194 = vld [vmem:[#allocation11 + $0x20] sm:$0xff]
    %v195 = vld [vmem:[#allocation11 + $0x28] sm:$0xff]
    %v196 = vld [vmem:[#allocation11 + $0x30] sm:$0xff]
    %v197 = vld [vmem:[#allocation11 + $0x38] sm:$0xff]
    %v198 = vld [vmem:[#allocation11 + $0x40] sm:$0xff]
    %v199 = vld [vmem:[#allocation11 + $0x48] sm:$0xff]
    %v200 = vld [vmem:[#allocation11 + $0x50] sm:$0xff]
    %v201 = vld [vmem:[#allocation11 + $0x58] sm:$0xff]
    %v202 = vld [vmem:[#allocation11 + $0x60] sm:$0xff]
    %v203 = vld [vmem:[#allocation11 + $0x68] sm:$0xff]
    %v204 = vld [vmem:[#allocation11 + $0x70] sm:$0xff]
    %v205 = vld [vmem:[#allocation11 + $0x78] sm:$0xff]
    %v206 = vld [vmem:[%s6] sm:$0x1]
    %v208 = vperm.slane %v206, 0
    %210 = vmatpush.msra.mxu0 %v205
    %211 = vmatpush.msra.mxu0 %v204
    %212 = vmatpush.msra.mxu0 %v203
    %213 = vmatpush.msra.mxu0 %v202
    %214 = vmatpush.msra.mxu0 %v201
    %215 = vmatpush.msra.mxu0 %v200
    %216 = vmatpush.msra.mxu0 %v199
    %217 = vmatpush.msra.mxu0 %v198
    %218 = vmatpush.msra.mxu0 %v197
    %219 = vmatpush.msra.mxu0 %v196
    %220 = vmatpush.msra.mxu0 %v195
    %221 = vmatpush.msra.mxu0 %v194
    %222 = vmatpush.msra.mxu0 %v193
    %223 = vmatpush.msra.mxu0 %v192
    %224 = vmatpush.msra.mxu0 %v191
    %225 = vmatpush.msra.mxu0 %v190
    %226 = vmatmul.f32.gmra.mxu0 %v189
    %v227 = vpop.f32.mrf.mxu0
    %v228 = vadd.f32 %v208, %v227
    %229 = vdwg.mxu0
    %v230 = vmax.f32 %v228, 0.0
    %v231 = vld [vmem:[#allocation12] sm:$0xff]
    %v232 = vld [vmem:[#allocation12 + $0x8] sm:$0xff]
    %v233 = vld [vmem:[#allocation12 + $0x10] sm:$0xff]
    %v234 = vld [vmem:[#allocation12 + $0x18] sm:$0xff]
    %v235 = vld [vmem:[#allocation12 + $0x20] sm:$0xff]
    %v236 = vld [vmem:[#allocation12 + $0x28] sm:$0xff]
    %v237 = vld [vmem:[#allocation12 + $0x30] sm:$0xff]
    %v238 = vld [vmem:[#allocation12 + $0x38] sm:$0xff]
    %v239 = vld [vmem:[#allocation12 + $0x40] sm:$0xff]
    %v240 = vld [vmem:[#allocation12 + $0x48] sm:$0xff]
    %v241 = vld [vmem:[#allocation12 + $0x50] sm:$0xff]
    %v242 = vld [vmem:[#allocation12 + $0x58] sm:$0xff]
    %v243 = vld [vmem:[#allocation12 + $0x60] sm:$0xff]
    %v244 = vld [vmem:[#allocation12 + $0x68] sm:$0xff]
    %v245 = vld [vmem:[#allocation12 + $0x70] sm:$0xff]
    %v246 = vld [vmem:[#allocation12 + $0x78] sm:$0xff]
    %v247 = vld [vmem:[%s8] sm:$0x1]
    %v249 = vperm.slane %v247, 0
    %251 = vmatpush.msra.mxu0 %v246
    %252 = vmatpush.msra.mxu0 %v245
    %253 = vmatpush.msra.mxu0 %v244
    %254 = vmatpush.msra.mxu0 %v243
    %255 = vmatpush.msra.mxu0 %v242
    %256 = vmatpush.msra.mxu0 %v241
    %257 = vmatpush.msra.mxu0 %v240
    %258 = vmatpush.msra.mxu0 %v239
    %259 = vmatpush.msra.mxu0 %v238
    %260 = vmatpush.msra.mxu0 %v237
    %261 = vmatpush.msra.mxu0 %v236
    %262 = vmatpush.msra.mxu0 %v235
    %263 = vmatpush.msra.mxu0 %v234
    %264 = vmatpush.msra.mxu0 %v233
    %265 = vmatpush.msra.mxu0 %v232
    %266 = vmatpush.msra.mxu0 %v231
    %267 = vmatmul.f32.gmra.mxu0 %v230
    %v268 = vpop.f32.mrf.mxu0
    %v269 = vadd.f32 %v249, %v268
    %270 = vdwg.mxu0
    %v271 = vmax.f32 %v269, 0.0
    %v272 = vld [vmem:[%s9] sm:$0x1]
    %v274 = vperm.slane %v272, 0
    %v276 = vmul.f32 %v271, %v274
    %277 = vadd.xlane.f32.xlu0 %v276
    %v278 = vpop.xlane.xlu0 %277
    %v279 = vld [vmem:[#allocation2] sm:$0x1]
    %v281 = vperm.slane %v279, 0
    %v283 = vadd.f32 %v278, %v281
    %285 = vset.pattern.permute.xlu0 0
    %286 = vperm.xlu0 %285, %v283
    %v287 = vpop.permute.xlu0 %286
    %289 = vst [vmem:[#allocation14] sm:$0xff] %v287
    // Predicated region
    $region70: #{tpu_custom_call.1} parent=1 // pred_check
      _
    $region71: #{tpu_custom_call.1} parent=1 // pred_check_branch
      %291 = sbr.rel (0) target = $region73
    $region72: #{tpu_custom_call.1} parent=1 // pred_region
      %293 = vsyncadd [#allocation5], 0
      %s295 = sshll.u32 [#allocation14], 4
      %s296 = int_to_ptr.vmem [resolvable:$true] %s295
      %s297 = sshll.u32 %s11, 4
      %s298 = int_to_ptr.hbm [resolvable:$true] %s297
      %300 = dma.vmem_to_hbm [thread:$0]  %s296, 128, %s298, [#allocation5]
    $region73: #{tpu_custom_call.1} parent=1 // pred_fallthru
      _
    // Predicated region
    $region74: #{tpu_custom_call.1} parent=1 // pred_check
      _
    $region75: #{tpu_custom_call.1} parent=1 // pred_check_branch
      %302 = sbr.rel (0) target = $region77
    $region76: #{tpu_custom_call.1} parent=1 // pred_region
      %304 = dma.done [#allocation5], 128
    $region77: #{tpu_custom_call.1} parent=1 // pred_fallthru
      _
    %305 = vsyncpa [#allocation4], 1
    %306 = vsyncpa [#allocation7], 1
    %307 = vsyncpa [#allocation10], 1
    %308 = vsyncpa [#allocation13], 1
    %309 = vsyncpa [#allocation5], 1

</llo_original>
